<compile_context>
chip_gen: v5e
topology: v5e:2x2
jax: 0.10.0
libtpu: 0.0.40
codegen_flags: <defaults>
</compile_context>

<pallas_src>
import functools

import jax
import jax.numpy as jnp
from jax.experimental import pallas as pl
from jax.experimental.pallas import tpu as pltpu


# Cap on lane-tiles per grid step in the streaming pool kernel: bounds the
# statically unrolled chunk-add loop to <= 64 VPU adds per step while keeping
# the x block >= ~1 MiB for C >= 32 (the 85%+-of-roofline tile regime).
_POOL_MAX_TILE = 8192


def _vmem_capacity_bytes():
    """Physical per-core VMEM (v5e/v6e: 128 MiB, v7x: 64 MiB); safe fallback."""
    try:
        return int(pltpu.get_tpu_info().vmem_capacity_bytes)
    except Exception:
        return 64 * 1024 * 1024


def _choose_tile(s, max_lanes):
    """Largest multiple-of-128 divisor of s that is <= max_lanes (s % 128 == 0)."""
    t = max(128, (min(max_lanes, s) // 128) * 128)
    while t > 128 and s % t:
        t -= 128
    return t


def _partial_lane_sum(x_ref):
    """Sum a (1, C, L) ref over its 128-lane tiles -> (1, C, 128) f32 value.

    Static, lane-aligned slices + VPU adds only; the single 128-lane cross-lane
    (XLU) reduce is deferred to the caller (done once, not once per tile).
    """
    l = x_ref.shape[-1]
    acc = x_ref[:, :, 0:128].astype(jnp.float32)
    for k in range(1, l // 128):
        acc = acc + x_ref[:, :, k * 128:(k + 1) * 128].astype(jnp.float32)
    return acc


def _gate_from_pooled(p, w1_ref, w2_ref):
    """sigmoid(relu(p @ w1) @ w2) for a (rows, C) pooled mean p (f32)."""
    h = jnp.maximum(
        jnp.dot(p, w1_ref[...], preferred_element_type=jnp.float32), 0.0)
    z = jnp.dot(h, w2_ref[...], preferred_element_type=jnp.float32)
    return 1.0 / (1.0 + jnp.exp(-z))


# ---------------------------------------------------------------------------
# Kernels
# ---------------------------------------------------------------------------

def _pool_mlp_kernel(x_ref, w1_ref, w2_ref, y_ref, acc_ref, *, inv_s):
    """Streaming spatial mean + channel-gate MLP for one batch row.

    grid = (B, ns): axis 0 'parallel' (per-batch, megacore-shardable),
    axis 1 'arbitrary' (spatial reduction; acc_ref persists across it).
    """
    s = pl.program_id(1)

    @pl.when(s == 0)
    def _():
        acc_ref[...] = jnp.zeros_like(acc_ref)

    # Pure VPU chunk adds into the 128-lane accumulator (no per-step XLU work).
    acc_ref[...] += _partial_lane_sum(x_ref)

    @pl.when(s == pl.num_programs(1) - 1)
    def _():
        p = jnp.sum(acc_ref[...], axis=-1) * inv_s      # (1, C): one XLU reduce
        y = _gate_from_pooled(p, w1_ref, w2_ref)        # (1, C)
        y_ref[...] = y[:, None, :]                      # (1, 1, C)


def _scale_kernel(x_ref, y_ref, o_ref):
    """o = x * y with y (B, C) broadcast along the spatial (lane) axis."""
    o_ref[...] = (x_ref[...] * y_ref[...][:, :, None]).astype(o_ref.dtype)


def _fused_kernel(x_ref, w1_ref, w2_ref, o_ref, *, inv_s):
    """Pool + MLP + sigmoid + scale for one batch row fully resident in VMEM."""
    part = _partial_lane_sum(x_ref)                     # (1, C, 128) VPU adds
    p = jnp.sum(part, axis=-1) * inv_s                  # (1, C): one XLU reduce
    y = _gate_from_pooled(p, w1_ref, w2_ref)            # (1, C)
    o_ref[...] = (x_ref[...] * y[:, :, None]).astype(o_ref.dtype)


# ---------------------------------------------------------------------------
# Wrapper
# ---------------------------------------------------------------------------

def channel_attention(x, w1, w2, *, alias_input=False, _force_two_pass=False):
    """ChannelAttention forward.

    x : (B, C, D, H, W)   activation (PyTorch NCDHW layout)
    w1: (C, C//r)         == fc1.weight.T  (Linear(C, C//r, bias=False))
    w2: (C//r, C)         == fc2.weight.T  (Linear(C//r, C, bias=False))
    alias_input: reuse x's HBM buffer for the scaled output (only safe if the
                 caller donates x / never reads it afterwards).
    """
    B, C, D, H, W = x.shape
    S = D * H * W
    itemsize = jnp.dtype(x.dtype).itemsize
    xf = x.reshape(B, C, S)

    # Lane-dense spatial axis: zero-pad S to a multiple of 128 if ragged.
    s_pad = ((S + 127) // 128) * 128
    if s_pad != S:
        xf = jnp.pad(xf, ((0, 0), (0, 0), (0, s_pad - S)))
    inv_s = 1.0 / S

    # Per-generation VMEM budgeting (v5e/v6e: 128 MiB, v7x: 64 MiB physical).
    vmem_cap = _vmem_capacity_bytes()
    vmem_limit = (vmem_cap * 5) // 8       # 80 MiB / 40 MiB scoped limit
    block_budget = vmem_cap // 16          # 8 MiB / 4 MiB per streamed block
    fused_budget = (vmem_cap * 3) // 8     # 48 MiB / 24 MiB for the fused path

    per_batch_bytes = C * s_pad * itemsize
    io_alias = {0: 0} if alias_input else {}
    use_fused = (not _force_two_pass
                 and 4 * per_batch_bytes <= fused_budget   # in + out, 2-deep
                 and s_pad // 128 <= 512)                   # bound chunk unroll

    if use_fused:
        # Single pass: x is read from HBM once (1R + 1W traffic).
        out = pl.pallas_call(
            functools.partial(_fused_kernel, inv_s=inv_s),
            grid=(B,),
            in_specs=[
                pl.BlockSpec((1, C, s_pad), lambda b: (b, 0, 0)),
                pl.BlockSpec(w1.shape, lambda b: (0, 0)),
                pl.BlockSpec(w2.shape, lambda b: (0, 0)),
            ],
            out_specs=pl.BlockSpec((1, C, s_pad), lambda b: (b, 0, 0)),
            out_shape=jax.ShapeDtypeStruct((B, C, s_pad), x.dtype),
            compiler_params=pltpu.CompilerParams(
                dimension_semantics=("parallel",),
                vmem_limit_bytes=vmem_limit),
            input_output_aliases=io_alias,
        )(xf, w1, w2)
    else:
        # Pass 1: streaming mean over S + gate MLP  ->  y (B, 1, C) f32.
        tile1 = _choose_tile(
            s_pad, min(_POOL_MAX_TILE, max(128, block_budget // (C * itemsize))))
        ns1 = s_pad // tile1
        y3 = pl.pallas_call(
            functools.partial(_pool_mlp_kernel, inv_s=inv_s),
            grid=(B, ns1),
            in_specs=[
                pl.BlockSpec((1, C, tile1), lambda b, s: (b, 0, s)),
                pl.BlockSpec(w1.shape, lambda b, s: (0, 0)),
                pl.BlockSpec(w2.shape, lambda b, s: (0, 0)),
            ],
            out_specs=pl.BlockSpec((1, 1, C), lambda b, s: (b, 0, 0)),
            out_shape=jax.ShapeDtypeStruct((B, 1, C), jnp.float32),
            scratch_shapes=[pltpu.VMEM((1, C, 128), jnp.float32)],
            compiler_params=pltpu.CompilerParams(
                dimension_semantics=("parallel", "arbitrary"),
                vmem_limit_bytes=vmem_limit),
        )(xf, w1, w2)
        y = y3.reshape(B, C)

        # Pass 2: out = x * y, large lane-dense tiles, megacore-shardable.
        # TODO(synk): add pipeline_mode=pl.Buffered(3) on the x spec if
        # profiling still shows exposed DMA after the VPU-only accumulate.
        tile2 = _choose_tile(s_pad, max(128, block_budget // (B * C * itemsize)))
        ns2 = s_pad // tile2
        out = pl.pallas_call(
            _scale_kernel,
            grid=(ns2,),
            in_specs=[
                pl.BlockSpec((B, C, tile2), lambda s: (0, 0, s)),
                pl.BlockSpec((B, C), lambda s: (0, 0)),
            ],
            out_specs=pl.BlockSpec((B, C, tile2), lambda s: (0, 0, s)),
            out_shape=jax.ShapeDtypeStruct((B, C, s_pad), x.dtype),
            compiler_params=pltpu.CompilerParams(
                dimension_semantics=("parallel",),
                vmem_limit_bytes=vmem_limit),
            input_output_aliases=io_alias,
        )(xf, y)

    if s_pad != S:
        out = out[:, :, :S]
    return out.reshape(B, C, D, H, W)


# ---------------------------------------------------------------------------

if __name__ == "__main__":
    B, C, D, H, W = 2, 32, 16, 16, 16
    reduction = 4

    key = jax.random.PRNGKey(0)
    kx, k1, k2 = jax.random.split(key, 3)
    x = jax.random.normal(kx, (B, C, D, H, W), jnp.float32)
    # nn.Linear weights, stored pre-transposed as (in, out) for right-multiply.
    w1 = 0.1 * jax.random.normal(k1, (C, C // reduction), jnp.float32)
    w2 = 0.1 * jax.random.normal(k2, (C // reduction, C), jnp.float32)

    # Plain-JAX reference (mirrors the PyTorch module exactly).
    p = jnp.mean(x.reshape(B, C, -1), axis=-1)                 # avg_pool -> (B, C)
    y_ref = jax.nn.sigmoid(jnp.maximum(p @ w1, 0.0) @ w2)      # fc1-ReLU-fc2-sigmoid
    ref = x * y_ref[:, :, None, None, None]

    # Fused (small-tensor) path: what the dispatcher picks for this size.
    out = jax.jit(channel_attention)(x, w1, w2)
    jax.block_until_ready(out)
    assert out.shape == x.shape and out.dtype == x.dtype
    assert jnp.allclose(out, ref, atol=1e-5, rtol=1e-5), float(
        jnp.max(jnp.abs(out - ref)))

    # Two-pass streaming path (used for tensors too big to keep in VMEM).
    out2 = jax.jit(functools.partial(channel_attention, _force_two_pass=True))(
        x, w1, w2)
    jax.block_until_ready(out2)
    assert out2.shape == x.shape and out2.dtype == x.dtype
    assert jnp.allclose(out2, ref, atol=1e-5, rtol=1e-5), float(
        jnp.max(jnp.abs(out2 - ref)))

    print("KERNEL_OK")
</pallas_src>

<mosaic_0001>
module attributes {stable_mosaic.version = 11 : i64} {
  func.func @_fused_kernel(%arg0: i32, %arg1: memref<1x32x4096xf32, #tpu.memory_space<vmem>>, %arg2: memref<32x8xf32, #tpu.memory_space<vmem>>, %arg3: memref<8x32xf32, #tpu.memory_space<vmem>>, %arg4: memref<1x32x4096xf32, #tpu.memory_space<vmem>>) attributes {dimension_semantics = [#tpu.dimension_semantics<parallel>], iteration_bounds = array<i64: 2>, scalar_prefetch = 0 : i64, scratch_operands = 0 : i64, tpu.core_type = #tpu.core_type<tc>, window_params = [{transform_indices = @transform_0, window_bounds = array<i64: 1, 32, 4096>}, {pipeline_mode = #tpu.pipeline_mode<synchronous>, transform_indices = @transform_1, window_bounds = array<i64: 32, 8>}, {pipeline_mode = #tpu.pipeline_mode<synchronous>, transform_indices = @transform_2, window_bounds = array<i64: 8, 32>}, {transform_indices = @transform_3, window_bounds = array<i64: 1, 32, 4096>}]} {
    %c0 = arith.constant 0 : index
    %c0_0 = arith.constant 0 : index
    %c0_1 = arith.constant 0 : index
    %0 = vector.load %arg1[%c0, %c0_0, %c0_1] : memref<1x32x4096xf32, #tpu.memory_space<vmem>>, vector<1x32x128xf32>
    %c0_2 = arith.constant 0 : index
    %c0_3 = arith.constant 0 : index
    %c128 = arith.constant 128 : index
    %1 = vector.load %arg1[%c0_2, %c0_3, %c128] : memref<1x32x4096xf32, #tpu.memory_space<vmem>>, vector<1x32x128xf32>
    %2 = arith.addf %0, %1 : vector<1x32x128xf32>
    %c0_4 = arith.constant 0 : index
    %c0_5 = arith.constant 0 : index
    %c256 = arith.constant 256 : index
    %3 = vector.load %arg1[%c0_4, %c0_5, %c256] : memref<1x32x4096xf32, #tpu.memory_space<vmem>>, vector<1x32x128xf32>
    %4 = arith.addf %2, %3 : vector<1x32x128xf32>
    %c0_6 = arith.constant 0 : index
    %c0_7 = arith.constant 0 : index
    %c384 = arith.constant 384 : index
    %5 = vector.load %arg1[%c0_6, %c0_7, %c384] : memref<1x32x4096xf32, #tpu.memory_space<vmem>>, vector<1x32x128xf32>
    %6 = arith.addf %4, %5 : vector<1x32x128xf32>
    %c0_8 = arith.constant 0 : index
    %c0_9 = arith.constant 0 : index
    %c512 = arith.constant 512 : index
    %7 = vector.load %arg1[%c0_8, %c0_9, %c512] : memref<1x32x4096xf32, #tpu.memory_space<vmem>>, vector<1x32x128xf32>
    %8 = arith.addf %6, %7 : vector<1x32x128xf32>
    %c0_10 = arith.constant 0 : index
    %c0_11 = arith.constant 0 : index
    %c640 = arith.constant 640 : index
    %9 = vector.load %arg1[%c0_10, %c0_11, %c640] : memref<1x32x4096xf32, #tpu.memory_space<vmem>>, vector<1x32x128xf32>
    %10 = arith.addf %8, %9 : vector<1x32x128xf32>
    %c0_12 = arith.constant 0 : index
    %c0_13 = arith.constant 0 : index
    %c768 = arith.constant 768 : index
    %11 = vector.load %arg1[%c0_12, %c0_13, %c768] : memref<1x32x4096xf32, #tpu.memory_space<vmem>>, vector<1x32x128xf32>
    %12 = arith.addf %10, %11 : vector<1x32x128xf32>
    %c0_14 = arith.constant 0 : index
    %c0_15 = arith.constant 0 : index
    %c896 = arith.constant 896 : index
    %13 = vector.load %arg1[%c0_14, %c0_15, %c896] : memref<1x32x4096xf32, #tpu.memory_space<vmem>>, vector<1x32x128xf32>
    %14 = arith.addf %12, %13 : vector<1x32x128xf32>
    %c0_16 = arith.constant 0 : index
    %c0_17 = arith.constant 0 : index
    %c1024 = arith.constant 1024 : index
    %15 = vector.load %arg1[%c0_16, %c0_17, %c1024] : memref<1x32x4096xf32, #tpu.memory_space<vmem>>, vector<1x32x128xf32>
    %16 = arith.addf %14, %15 : vector<1x32x128xf32>
    %c0_18 = arith.constant 0 : index
    %c0_19 = arith.constant 0 : index
    %c1152 = arith.constant 1152 : index
    %17 = vector.load %arg1[%c0_18, %c0_19, %c1152] : memref<1x32x4096xf32, #tpu.memory_space<vmem>>, vector<1x32x128xf32>
    %18 = arith.addf %16, %17 : vector<1x32x128xf32>
    %c0_20 = arith.constant 0 : index
    %c0_21 = arith.constant 0 : index
    %c1280 = arith.constant 1280 : index
    %19 = vector.load %arg1[%c0_20, %c0_21, %c1280] : memref<1x32x4096xf32, #tpu.memory_space<vmem>>, vector<1x32x128xf32>
    %20 = arith.addf %18, %19 : vector<1x32x128xf32>
    %c0_22 = arith.constant 0 : index
    %c0_23 = arith.constant 0 : index
    %c1408 = arith.constant 1408 : index
    %21 = vector.load %arg1[%c0_22, %c0_23, %c1408] : memref<1x32x4096xf32, #tpu.memory_space<vmem>>, vector<1x32x128xf32>
    %22 = arith.addf %20, %21 : vector<1x32x128xf32>
    %c0_24 = arith.constant 0 : index
    %c0_25 = arith.constant 0 : index
    %c1536 = arith.constant 1536 : index
    %23 = vector.load %arg1[%c0_24, %c0_25, %c1536] : memref<1x32x4096xf32, #tpu.memory_space<vmem>>, vector<1x32x128xf32>
    %24 = arith.addf %22, %23 : vector<1x32x128xf32>
    %c0_26 = arith.constant 0 : index
    %c0_27 = arith.constant 0 : index
    %c1664 = arith.constant 1664 : index
    %25 = vector.load %arg1[%c0_26, %c0_27, %c1664] : memref<1x32x4096xf32, #tpu.memory_space<vmem>>, vector<1x32x128xf32>
    %26 = arith.addf %24, %25 : vector<1x32x128xf32>
    %c0_28 = arith.constant 0 : index
    %c0_29 = arith.constant 0 : index
    %c1792 = arith.constant 1792 : index
    %27 = vector.load %arg1[%c0_28, %c0_29, %c1792] : memref<1x32x4096xf32, #tpu.memory_space<vmem>>, vector<1x32x128xf32>
    %28 = arith.addf %26, %27 : vector<1x32x128xf32>
    %c0_30 = arith.constant 0 : index
    %c0_31 = arith.constant 0 : index
    %c1920 = arith.constant 1920 : index
    %29 = vector.load %arg1[%c0_30, %c0_31, %c1920] : memref<1x32x4096xf32, #tpu.memory_space<vmem>>, vector<1x32x128xf32>
    %30 = arith.addf %28, %29 : vector<1x32x128xf32>
    %c0_32 = arith.constant 0 : index
    %c0_33 = arith.constant 0 : index
    %c2048 = arith.constant 2048 : index
    %31 = vector.load %arg1[%c0_32, %c0_33, %c2048] : memref<1x32x4096xf32, #tpu.memory_space<vmem>>, vector<1x32x128xf32>
    %32 = arith.addf %30, %31 : vector<1x32x128xf32>
    %c0_34 = arith.constant 0 : index
    %c0_35 = arith.constant 0 : index
    %c2176 = arith.constant 2176 : index
    %33 = vector.load %arg1[%c0_34, %c0_35, %c2176] : memref<1x32x4096xf32, #tpu.memory_space<vmem>>, vector<1x32x128xf32>
    %34 = arith.addf %32, %33 : vector<1x32x128xf32>
    %c0_36 = arith.constant 0 : index
    %c0_37 = arith.constant 0 : index
    %c2304 = arith.constant 2304 : index
    %35 = vector.load %arg1[%c0_36, %c0_37, %c2304] : memref<1x32x4096xf32, #tpu.memory_space<vmem>>, vector<1x32x128xf32>
    %36 = arith.addf %34, %35 : vector<1x32x128xf32>
    %c0_38 = arith.constant 0 : index
    %c0_39 = arith.constant 0 : index
    %c2432 = arith.constant 2432 : index
    %37 = vector.load %arg1[%c0_38, %c0_39, %c2432] : memref<1x32x4096xf32, #tpu.memory_space<vmem>>, vector<1x32x128xf32>
    %38 = arith.addf %36, %37 : vector<1x32x128xf32>
    %c0_40 = arith.constant 0 : index
    %c0_41 = arith.constant 0 : index
    %c2560 = arith.constant 2560 : index
    %39 = vector.load %arg1[%c0_40, %c0_41, %c2560] : memref<1x32x4096xf32, #tpu.memory_space<vmem>>, vector<1x32x128xf32>
    %40 = arith.addf %38, %39 : vector<1x32x128xf32>
    %c0_42 = arith.constant 0 : index
    %c0_43 = arith.constant 0 : index
    %c2688 = arith.constant 2688 : index
    %41 = vector.load %arg1[%c0_42, %c0_43, %c2688] : memref<1x32x4096xf32, #tpu.memory_space<vmem>>, vector<1x32x128xf32>
    %42 = arith.addf %40, %41 : vector<1x32x128xf32>
    %c0_44 = arith.constant 0 : index
    %c0_45 = arith.constant 0 : index
    %c2816 = arith.constant 2816 : index
    %43 = vector.load %arg1[%c0_44, %c0_45, %c2816] : memref<1x32x4096xf32, #tpu.memory_space<vmem>>, vector<1x32x128xf32>
    %44 = arith.addf %42, %43 : vector<1x32x128xf32>
    %c0_46 = arith.constant 0 : index
    %c0_47 = arith.constant 0 : index
    %c2944 = arith.constant 2944 : index
    %45 = vector.load %arg1[%c0_46, %c0_47, %c2944] : memref<1x32x4096xf32, #tpu.memory_space<vmem>>, vector<1x32x128xf32>
    %46 = arith.addf %44, %45 : vector<1x32x128xf32>
    %c0_48 = arith.constant 0 : index
    %c0_49 = arith.constant 0 : index
    %c3072 = arith.constant 3072 : index
    %47 = vector.load %arg1[%c0_48, %c0_49, %c3072] : memref<1x32x4096xf32, #tpu.memory_space<vmem>>, vector<1x32x128xf32>
    %48 = arith.addf %46, %47 : vector<1x32x128xf32>
    %c0_50 = arith.constant 0 : index
    %c0_51 = arith.constant 0 : index
    %c3200 = arith.constant 3200 : index
    %49 = vector.load %arg1[%c0_50, %c0_51, %c3200] : memref<1x32x4096xf32, #tpu.memory_space<vmem>>, vector<1x32x128xf32>
    %50 = arith.addf %48, %49 : vector<1x32x128xf32>
    %c0_52 = arith.constant 0 : index
    %c0_53 = arith.constant 0 : index
    %c3328 = arith.constant 3328 : index
    %51 = vector.load %arg1[%c0_52, %c0_53, %c3328] : memref<1x32x4096xf32, #tpu.memory_space<vmem>>, vector<1x32x128xf32>
    %52 = arith.addf %50, %51 : vector<1x32x128xf32>
    %c0_54 = arith.constant 0 : index
    %c0_55 = arith.constant 0 : index
    %c3456 = arith.constant 3456 : index
    %53 = vector.load %arg1[%c0_54, %c0_55, %c3456] : memref<1x32x4096xf32, #tpu.memory_space<vmem>>, vector<1x32x128xf32>
    %54 = arith.addf %52, %53 : vector<1x32x128xf32>
    %c0_56 = arith.constant 0 : index
    %c0_57 = arith.constant 0 : index
    %c3584 = arith.constant 3584 : index
    %55 = vector.load %arg1[%c0_56, %c0_57, %c3584] : memref<1x32x4096xf32, #tpu.memory_space<vmem>>, vector<1x32x128xf32>
    %56 = arith.addf %54, %55 : vector<1x32x128xf32>
    %c0_58 = arith.constant 0 : index
    %c0_59 = arith.constant 0 : index
    %c3712 = arith.constant 3712 : index
    %57 = vector.load %arg1[%c0_58, %c0_59, %c3712] : memref<1x32x4096xf32, #tpu.memory_space<vmem>>, vector<1x32x128xf32>
    %58 = arith.addf %56, %57 : vector<1x32x128xf32>
    %c0_60 = arith.constant 0 : index
    %c0_61 = arith.constant 0 : index
    %c3840 = arith.constant 3840 : index
    %59 = vector.load %arg1[%c0_60, %c0_61, %c3840] : memref<1x32x4096xf32, #tpu.memory_space<vmem>>, vector<1x32x128xf32>
    %60 = arith.addf %58, %59 : vector<1x32x128xf32>
    %c0_62 = arith.constant 0 : index
    %c0_63 = arith.constant 0 : index
    %c3968 = arith.constant 3968 : index
    %61 = vector.load %arg1[%c0_62, %c0_63, %c3968] : memref<1x32x4096xf32, #tpu.memory_space<vmem>>, vector<1x32x128xf32>
    %62 = arith.addf %60, %61 : vector<1x32x128xf32>
    %cst = arith.constant dense<0.000000e+00> : vector<1x32xf32>
    %63 = vector.multi_reduction <add>, %62, %cst [2] : vector<1x32x128xf32> to vector<1x32xf32>
    %cst_64 = arith.constant 2.44140625E-4 : f32
    %64 = vector.broadcast %cst_64 : f32 to vector<1x32xf32>
    %65 = arith.mulf %63, %64 : vector<1x32xf32>
    %c0_65 = arith.constant 0 : index
    %c0_66 = arith.constant 0 : index
    %66 = vector.load %arg2[%c0_65, %c0_66] : memref<32x8xf32, #tpu.memory_space<vmem>>, vector<32x8xf32>
    %cst_67 = arith.constant dense<0.000000e+00> : vector<1x8xf32>
    %67 = tpu.matmul %65, %66, %cst_67 {dimension_numbers = #tpu.dot_dimension_numbers<[1], [0], [0], [1], [0, 0, 1, 1], [], []>} : vector<1x32xf32>, vector<32x8xf32>, vector<1x8xf32> -> vector<1x8xf32>
    %cst_68 = arith.constant 0.000000e+00 : f32
    %68 = vector.broadcast %cst_68 : f32 to vector<1x8xf32>
    %69 = arith.maximumf %67, %68 : vector<1x8xf32>
    %c0_69 = arith.constant 0 : index
    %c0_70 = arith.constant 0 : index
    %70 = vector.load %arg3[%c0_69, %c0_70] : memref<8x32xf32, #tpu.memory_space<vmem>>, vector<8x32xf32>
    %cst_71 = arith.constant dense<0.000000e+00> : vector<1x32xf32>
    %71 = tpu.matmul %69, %70, %cst_71 {dimension_numbers = #tpu.dot_dimension_numbers<[1], [0], [0], [1], [0, 0, 1, 1], [], []>} : vector<1x8xf32>, vector<8x32xf32>, vector<1x32xf32> -> vector<1x32xf32>
    %cst_72 = arith.constant 0.000000e+00 : f32
    %72 = vector.broadcast %cst_72 : f32 to vector<1x32xf32>
    %73 = arith.subf %72, %71 : vector<1x32xf32>
    %74 = math.exp %73 : vector<1x32xf32>
    %cst_73 = arith.constant 1.000000e+00 : f32
    %75 = vector.broadcast %cst_73 : f32 to vector<1x32xf32>
    %76 = arith.addf %75, %74 : vector<1x32xf32>
    %cst_74 = arith.constant 1.000000e+00 : f32
    %77 = vector.broadcast %cst_74 : f32 to vector<1x32xf32>
    %78 = arith.divf %77, %76 : vector<1x32xf32>
    %c0_75 = arith.constant 0 : index
    %c0_76 = arith.constant 0 : index
    %c0_77 = arith.constant 0 : index
    %79 = vector.load %arg1[%c0_75, %c0_76, %c0_77] : memref<1x32x4096xf32, #tpu.memory_space<vmem>>, vector<1x32x4096xf32>
    %80 = vector.shape_cast %78 : vector<1x32xf32> to vector<1x32x1xf32>
    %81 = vector.broadcast %80 : vector<1x32x1xf32> to vector<1x32x4096xf32>
    %82 = arith.mulf %79, %81 : vector<1x32x4096xf32>
    %c0_78 = arith.constant 0 : index
    %c0_79 = arith.constant 0 : index
    %c0_80 = arith.constant 0 : index
    %83 = vector.load %arg4[%c0_78, %c0_79, %c0_80] : memref<1x32x4096xf32, #tpu.memory_space<vmem>>, vector<1x32x4096xf32>
    tpu.vector_store %arg4[%c0_78, %c0_79, %c0_80], %82 {strides = array<i32>} : memref<1x32x4096xf32, #tpu.memory_space<vmem>>, vector<1x32x4096xf32>,
    return
  }
  func.func @transform_0(%arg0: i32) -> (i32, i32, i32) {
    %c0_i32 = arith.constant 0 : i32
    %c0_i32_0 = arith.constant 0 : i32
    %c0_i32_1 = arith.constant 0 : i32
    return %arg0, %c0_i32, %c0_i32_0 : i32, i32, i32
  }
  func.func @transform_1(%arg0: i32) -> (i32, i32) {
    %c0_i32 = arith.constant 0 : i32
    %c0_i32_0 = arith.constant 0 : i32
    %c0_i32_1 = arith.constant 0 : i32
    return %c0_i32, %c0_i32_0 : i32, i32
  }
  func.func @transform_2(%arg0: i32) -> (i32, i32) {
    %c0_i32 = arith.constant 0 : i32
    %c0_i32_0 = arith.constant 0 : i32
    %c0_i32_1 = arith.constant 0 : i32
    return %c0_i32, %c0_i32_0 : i32, i32
  }
  func.func @transform_3(%arg0: i32) -> (i32, i32, i32) {
    %c0_i32 = arith.constant 0 : i32
    %c0_i32_0 = arith.constant 0 : i32
    %c0_i32_1 = arith.constant 0 : i32
    return %arg0, %c0_i32, %c0_i32_0 : i32, i32, i32
  }
}

</mosaic_0001>

<llo_original>
// kernel: channel_attention.1
$region0: #{channel_attention.1}
  #allocation0 [shape = 'u32[]', space=smem, size = 0x4, offset = 0x4, fixed_abs, tag = 'smem constant byte address 0x4 - core index']
  #allocation1 [shape = 'u32[72,128]{1,0:T(1,128)}', space=vmem, size = 0x9000, scoped, tag = 'internal scratch']
  %s0 = inlined_call_operand.vmem [shape: f32[2,32,4096], index: 0, kind: input, shape index: {}]
  %s1 = inlined_call_operand.vmem [shape: f32[32,8], index: 1, kind: input, shape index: {}]
  %s2 = inlined_call_operand.vmem [shape: f32[8,32], index: 2, kind: input, shape index: {}]
  %s3 = inlined_call_operand.vmem [shape: f32[2,32,4096], index: 3, kind: output, shape index: {}]
  %s4 = sld [smem:[#allocation0]]
  $region45: #{channel_attention.1} parent=0
    _
  %s6 = ssub.s32 1, %s4
  %s7 = scalar_select 0, %s6, %s4
  loop: start=0, step=1, limit=4
  $region2: #{channel_attention.1} parent=0 // loop_pre_header
    _
  $region3: #{channel_attention.1} parent=0 // loop_header
    %s9 = sphi 0, %s13
    %p10 = scmp.ge.s32.totalorder %s9, 4
    %s19 = sphi 0, %s21
    %s22 = sphi 0, %s19
    %s23 = sphi 0, %s22
    %s39 = sphi 0, %s23
    %s43 = sphi 0, %s43
    %s45 = sphi 0, %s43
    %s46 = sphi 0, %s45
    %s60 = sphi 0, %s46
    %s64 = sphi 0, %s64
    %s66 = sphi 0, %s64
    %s67 = sphi 0, %s66
    %s81 = sphi 0, %s67
    %s87 = sphi 0, %s89
    %s90 = sphi 0, %s87
    %s91 = sphi 0, %s90
    %s107 = sphi 0, %s91
  $region4: #{channel_attention.1} parent=0 // loop_header_branch
    %12 = sbr.rel (%p10) target = $region8
  $region5: #{channel_attention.1} parent=0 // loop_body
    %s14 = ssub.s32 %s9, 1
    %s15 = ssub.s32 %s9, 2
    %s16 = sadd.s32 %s9, 1
    %s17 = ssub.s32 %s9, %s16
    %p18 = scmp.eq.s32.totalorder %s17, 0
    %s20 = sadd.s32 %s19, 1
    %s21 = scalar_select %p18, %s19, %s20
    %p24 = pneg %p18
    %p25 = scmp.eq.s32.totalorder %s9, 1
    %p26 = por %p24, %p25
    %p27 = scmp.ne.s32.totalorder %s19, %s22
    %p28 = scmp.eq.s32.totalorder %s9, 0
    %p29 = por %p27, %p28
    %p30 = scmp.ne.s32.totalorder %s19, %s22
    %p31 = scmp.eq.s32.totalorder %s14, 1
    %p32 = por %p30, %p31
    %p33 = scmp.ne.s32.totalorder %s22, %s23
    %p34 = scmp.eq.s32.totalorder %s14, 0
    %p35 = por %p33, %p34
    %p36 = scmp.ne.s32.totalorder %s22, %s23
    %p37 = scmp.eq.s32.totalorder %s15, 1
    %p38 = por %p36, %p37
    %p40 = scmp.ne.s32.totalorder %s23, %s39
    %p41 = scmp.eq.s32.totalorder %s15, 0
    %p42 = por %p40, %p41
    %s44 = sadd.s32 %s43, 1
    %p47 = scmp.eq.s32.totalorder %s9, 1
    %p48 = scmp.ne.s32.totalorder %s43, %s45
    %p49 = scmp.eq.s32.totalorder %s9, 0
    %p50 = por %p48, %p49
    %p51 = scmp.ne.s32.totalorder %s43, %s45
    %p52 = scmp.eq.s32.totalorder %s14, 1
    %p53 = por %p51, %p52
    %p54 = scmp.ne.s32.totalorder %s45, %s46
    %p55 = scmp.eq.s32.totalorder %s14, 0
    %p56 = por %p54, %p55
    %p57 = scmp.ne.s32.totalorder %s45, %s46
    %p58 = scmp.eq.s32.totalorder %s15, 1
    %p59 = por %p57, %p58
    %p61 = scmp.ne.s32.totalorder %s46, %s60
    %p62 = scmp.eq.s32.totalorder %s15, 0
    %p63 = por %p61, %p62
    %s65 = sadd.s32 %s64, 1
    %p68 = scmp.eq.s32.totalorder %s9, 1
    %p69 = scmp.ne.s32.totalorder %s64, %s66
    %p70 = scmp.eq.s32.totalorder %s9, 0
    %p71 = por %p69, %p70
    %p72 = scmp.ne.s32.totalorder %s64, %s66
    %p73 = scmp.eq.s32.totalorder %s14, 1
    %p74 = por %p72, %p73
    %p75 = scmp.ne.s32.totalorder %s66, %s67
    %p76 = scmp.eq.s32.totalorder %s14, 0
    %p77 = por %p75, %p76
    %p78 = scmp.ne.s32.totalorder %s66, %s67
    %p79 = scmp.eq.s32.totalorder %s15, 1
    %p80 = por %p78, %p79
    %p82 = scmp.ne.s32.totalorder %s67, %s81
    %p83 = scmp.eq.s32.totalorder %s15, 0
    %p84 = por %p82, %p83
    %s85 = ssub.s32 %s9, %s16
    %p86 = scmp.eq.s32.totalorder %s85, 0
    %s88 = sadd.s32 %s87, 1
    %s89 = scalar_select %p86, %s87, %s88
    %p92 = pneg %p86
    %p93 = scmp.eq.s32.totalorder %s9, 1
    %p94 = por %p92, %p93
    %p95 = scmp.ne.s32.totalorder %s87, %s90
    %p96 = scmp.eq.s32.totalorder %s9, 0
    %p97 = por %p95, %p96
    %p98 = scmp.ne.s32.totalorder %s87, %s90
    %p99 = scmp.eq.s32.totalorder %s14, 1
    %p100 = por %p98, %p99
    %p101 = scmp.ne.s32.totalorder %s90, %s91
    %p102 = scmp.eq.s32.totalorder %s14, 0
    %p103 = por %p101, %p102
    %p104 = scmp.ne.s32.totalorder %s90, %s91
    %p105 = scmp.eq.s32.totalorder %s15, 1
    %p106 = por %p104, %p105
    %p108 = scmp.ne.s32.totalorder %s91, %s107
    %p109 = scmp.eq.s32.totalorder %s15, 0
    %p110 = por %p108, %p109
    %p111 = scmp.le.s32.totalorder 1, %s9
    %p112 = scmp.lt.s32.totalorder %s9, 3
    %p113 = pnand %p111, %p112
    %p114 = pneg %p113
    // Predicated region
    $region9: #{channel_attention.1} parent=5 // pred_check
      _
    $region10: #{channel_attention.1} parent=5 // pred_check_branch
      %116 = sbr.rel (%p113) target = $region12
    $region11: #{channel_attention.1} parent=5 // pred_region
      %s117 = ssub.s32 %s9, 1
      // Predicated region
      $region13: #{channel_attention.1} parent=11 // pred_check
        %p118 = pneg %p56
      $region14: #{channel_attention.1} parent=11 // pred_check_branch
        %120 = sbr.rel (%p118) target = $region16
      $region15: #{channel_attention.1} parent=11 // pred_region
        _
      $region16: #{channel_attention.1} parent=11 // pred_fallthru
        _
      // Predicated region
      $region17: #{channel_attention.1} parent=11 // pred_check
        %p121 = pneg %p77
      $region18: #{channel_attention.1} parent=11 // pred_check_branch
        %123 = sbr.rel (%p121) target = $region20
      $region19: #{channel_attention.1} parent=11 // pred_region
        _
      $region20: #{channel_attention.1} parent=11 // pred_fallthru
        _
    $region12: #{channel_attention.1} parent=5 // pred_fallthru
      _
    %p124 = scmp.lt.s32.totalorder %s9, 2
    // Predicated region
    $region21: #{channel_attention.1} parent=5 // pred_check
      %p125 = pneg %p124
    $region22: #{channel_attention.1} parent=5 // pred_check_branch
      %127 = sbr.rel (%p125) target = $region24
    $region23: #{channel_attention.1} parent=5 // pred_region
      // Predicated region
      $region25: #{channel_attention.1} parent=23 // pred_check
        %p128 = pneg %p29
      $region26: #{channel_attention.1} parent=23 // pred_check_branch
        %130 = sbr.rel (%p128) target = $region28
      $region27: #{channel_attention.1} parent=23 // pred_region
        %p131 = scmp.lt.s32.totalorder %s9, 1
        %s132 = scalar_select %p131, %s9, 1
        %s133 = smul.addr %s132, 128
        %s134 = smul.addr %s133, 8
        %s135 = scalar_lea.vmem %s0, %s134
      $region28: #{channel_attention.1} parent=23 // pred_fallthru
        _
    $region24: #{channel_attention.1} parent=5 // pred_fallthru
      _
    %p136 = scmp.le.s32.totalorder 1, %s9
    %p137 = scmp.lt.s32.totalorder %s9, 3
    %p138 = pnand %p136, %p137
    %p139 = pneg %p138
    // Predicated region
    $region29: #{channel_attention.1} parent=5 // pred_check
      _
    $region30: #{channel_attention.1} parent=5 // pred_check_branch
      %141 = sbr.rel (%p138) target = $region32
    $region31: #{channel_attention.1} parent=5 // pred_region
      %s142 = ssub.s32 %s9, 1
      %p143 = scmp.lt.s32.totalorder %s14, 1
      %s144 = scalar_select %p143, %s14, 1
      %s145 = smul.addr %s144, 128
      %s146 = smul.addr %s145, 8
      %s147 = scalar_lea.vmem %s0, %s146
      %p148 = pneg %p35
      %p149 = pneg %p32
      %p150 = pneg %p56
      %p151 = pneg %p53
      %p152 = pneg %p77
      %p153 = pneg %p74
      %p154 = pneg %p103
      %p155 = pneg %p100
      %p156 = scmp.lt.s32.totalorder %s14, 1
      %s157 = scalar_select %p156, %s14, 1
      %s158 = smul.addr %s157, 128
      %s159 = smul.addr %s158, 8
      %s160 = scalar_lea.vmem %s3, %s159
      %p161 = scmp.lt.s32.totalorder %s14, 1
      %s162 = scalar_select %p161, %s14, 1
      %s163 = smul.addr %s162, 128
      %s164 = smul.addr %s163, 8
      %s165 = scalar_lea.vmem %s0, %s164
      %p166 = scmp.lt.s32.totalorder %s14, 1
      %s167 = scalar_select %p166, %s14, 1
      %s168 = smul.addr %s167, 128
      %s169 = smul.addr %s168, 8
      %s170 = scalar_lea.vmem %s3, %s169
      %v171 = vld [vmem:[%s165] sm:$0xff]
      %v172 = vld [vmem:[%s165 + $0x100] sm:$0xff]
      %v173 = vld [vmem:[%s165 + $0x200] sm:$0xff]
      %v174 = vld [vmem:[%s165 + $0x300] sm:$0xff]
      %v175 = vld [vmem:[%s165 + $0x8] sm:$0xff]
      %v176 = vld [vmem:[%s165 + $0x108] sm:$0xff]
      %v177 = vld [vmem:[%s165 + $0x208] sm:$0xff]
      %v178 = vld [vmem:[%s165 + $0x308] sm:$0xff]
      %v179 = vadd.f32 %v171, %v175
      %v180 = vadd.f32 %v172, %v176
      %v181 = vadd.f32 %v173, %v177
      %v182 = vadd.f32 %v174, %v178
      %v183 = vld [vmem:[%s165 + $0x10] sm:$0xff]
      %v184 = vld [vmem:[%s165 + $0x110] sm:$0xff]
      %v185 = vld [vmem:[%s165 + $0x210] sm:$0xff]
      %v186 = vld [vmem:[%s165 + $0x310] sm:$0xff]
      %v187 = vadd.f32 %v179, %v183
      %v188 = vadd.f32 %v180, %v184
      %v189 = vadd.f32 %v181, %v185
      %v190 = vadd.f32 %v182, %v186
      %v191 = vld [vmem:[%s165 + $0x18] sm:$0xff]
      %v192 = vld [vmem:[%s165 + $0x118] sm:$0xff]
      %v193 = vld [vmem:[%s165 + $0x218] sm:$0xff]
      %v194 = vld [vmem:[%s165 + $0x318] sm:$0xff]
      %v195 = vadd.f32 %v187, %v191
      %v196 = vadd.f32 %v188, %v192
      %v197 = vadd.f32 %v189, %v193
      %v198 = vadd.f32 %v190, %v194
      %v199 = vld [vmem:[%s165 + $0x20] sm:$0xff]
      %v200 = vld [vmem:[%s165 + $0x120] sm:$0xff]
      %v201 = vld [vmem:[%s165 + $0x220] sm:$0xff]
      %v202 = vld [vmem:[%s165 + $0x320] sm:$0xff]
      %v203 = vadd.f32 %v195, %v199
      %v204 = vadd.f32 %v196, %v200
      %v205 = vadd.f32 %v197, %v201
      %v206 = vadd.f32 %v198, %v202
      %v207 = vld [vmem:[%s165 + $0x28] sm:$0xff]
      %v208 = vld [vmem:[%s165 + $0x128] sm:$0xff]
      %v209 = vld [vmem:[%s165 + $0x228] sm:$0xff]
      %v210 = vld [vmem:[%s165 + $0x328] sm:$0xff]
      %v211 = vadd.f32 %v203, %v207
      %v212 = vadd.f32 %v204, %v208
      %v213 = vadd.f32 %v205, %v209
      %v214 = vadd.f32 %v206, %v210
      %v215 = vld [vmem:[%s165 + $0x30] sm:$0xff]
      %v216 = vld [vmem:[%s165 + $0x130] sm:$0xff]
      %v217 = vld [vmem:[%s165 + $0x230] sm:$0xff]
      %v218 = vld [vmem:[%s165 + $0x330] sm:$0xff]
      %v219 = vadd.f32 %v211, %v215
      %v220 = vadd.f32 %v212, %v216
      %v221 = vadd.f32 %v213, %v217
      %v222 = vadd.f32 %v214, %v218
      %v223 = vld [vmem:[%s165 + $0x38] sm:$0xff]
      %v224 = vld [vmem:[%s165 + $0x138] sm:$0xff]
      %v225 = vld [vmem:[%s165 + $0x238] sm:$0xff]
      %v226 = vld [vmem:[%s165 + $0x338] sm:$0xff]
      %v227 = vadd.f32 %v219, %v223
      %v228 = vadd.f32 %v220, %v224
      %v229 = vadd.f32 %v221, %v225
      %v230 = vadd.f32 %v222, %v226
      %v231 = vld [vmem:[%s165 + $0x40] sm:$0xff]
      %v232 = vld [vmem:[%s165 + $0x140] sm:$0xff]
      %v233 = vld [vmem:[%s165 + $0x240] sm:$0xff]
      %v234 = vld [vmem:[%s165 + $0x340] sm:$0xff]
      %v235 = vadd.f32 %v227, %v231
      %v236 = vadd.f32 %v228, %v232
      %v237 = vadd.f32 %v229, %v233
      %v238 = vadd.f32 %v230, %v234
      %v239 = vld [vmem:[%s165 + $0x48] sm:$0xff]
      %v240 = vld [vmem:[%s165 + $0x148] sm:$0xff]
      %v241 = vld [vmem:[%s165 + $0x248] sm:$0xff]
      %v242 = vld [vmem:[%s165 + $0x348] sm:$0xff]
      %v243 = vadd.f32 %v235, %v239
      %v244 = vadd.f32 %v236, %v240
      %v245 = vadd.f32 %v237, %v241
      %v246 = vadd.f32 %v238, %v242
      %v247 = vld [vmem:[%s165 + $0x50] sm:$0xff]
      %v248 = vld [vmem:[%s165 + $0x150] sm:$0xff]
      %v249 = vld [vmem:[%s165 + $0x250] sm:$0xff]
      %v250 = vld [vmem:[%s165 + $0x350] sm:$0xff]
      %v251 = vadd.f32 %v243, %v247
      %v252 = vadd.f32 %v244, %v248
      %v253 = vadd.f32 %v245, %v249
      %v254 = vadd.f32 %v246, %v250
      %v255 = vld [vmem:[%s165 + $0x58] sm:$0xff]
      %v256 = vld [vmem:[%s165 + $0x158] sm:$0xff]
      %v257 = vld [vmem:[%s165 + $0x258] sm:$0xff]
      %v258 = vld [vmem:[%s165 + $0x358] sm:$0xff]
      %v259 = vadd.f32 %v251, %v255
      %v260 = vadd.f32 %v252, %v256
      %v261 = vadd.f32 %v253, %v257
      %v262 = vadd.f32 %v254, %v258
      %v263 = vld [vmem:[%s165 + $0x60] sm:$0xff]
      %v264 = vld [vmem:[%s165 + $0x160] sm:$0xff]
      %v265 = vld [vmem:[%s165 + $0x260] sm:$0xff]
      %v266 = vld [vmem:[%s165 + $0x360] sm:$0xff]
      %v267 = vadd.f32 %v259, %v263
      %v268 = vadd.f32 %v260, %v264
      %v269 = vadd.f32 %v261, %v265
      %v270 = vadd.f32 %v262, %v266
      %v271 = vld [vmem:[%s165 + $0x68] sm:$0xff]
      %v272 = vld [vmem:[%s165 + $0x168] sm:$0xff]
      %v273 = vld [vmem:[%s165 + $0x268] sm:$0xff]
      %v274 = vld [vmem:[%s165 + $0x368] sm:$0xff]
      %v275 = vadd.f32 %v267, %v271
      %v276 = vadd.f32 %v268, %v272
      %v277 = vadd.f32 %v269, %v273
      %v278 = vadd.f32 %v270, %v274
      %v279 = vld [vmem:[%s165 + $0x70] sm:$0xff]
      %v280 = vld [vmem:[%s165 + $0x170] sm:$0xff]
      %v281 = vld [vmem:[%s165 + $0x270] sm:$0xff]
      %v282 = vld [vmem:[%s165 + $0x370] sm:$0xff]
      %v283 = vadd.f32 %v275, %v279
      %v284 = vadd.f32 %v276, %v280
      %v285 = vadd.f32 %v277, %v281
      %v286 = vadd.f32 %v278, %v282
      %v287 = vld [vmem:[%s165 + $0x78] sm:$0xff]
      %v288 = vld [vmem:[%s165 + $0x178] sm:$0xff]
      %v289 = vld [vmem:[%s165 + $0x278] sm:$0xff]
      %v290 = vld [vmem:[%s165 + $0x378] sm:$0xff]
      %v291 = vadd.f32 %v283, %v287
      %v292 = vadd.f32 %v284, %v288
      %v293 = vadd.f32 %v285, %v289
      %v294 = vadd.f32 %v286, %v290
      %v295 = vld [vmem:[%s165 + $0x80] sm:$0xff]
      %v296 = vld [vmem:[%s165 + $0x180] sm:$0xff]
      %v297 = vld [vmem:[%s165 + $0x280] sm:$0xff]
      %v298 = vld [vmem:[%s165 + $0x380] sm:$0xff]
      %v299 = vadd.f32 %v291, %v295
      %v300 = vadd.f32 %v292, %v296
      %v301 = vadd.f32 %v293, %v297
      %v302 = vadd.f32 %v294, %v298
      %v303 = vld [vmem:[%s165 + $0x88] sm:$0xff]
      %v304 = vld [vmem:[%s165 + $0x188] sm:$0xff]
      %v305 = vld [vmem:[%s165 + $0x288] sm:$0xff]
      %v306 = vld [vmem:[%s165 + $0x388] sm:$0xff]
      %v307 = vadd.f32 %v299, %v303
      %v308 = vadd.f32 %v300, %v304
      %v309 = vadd.f32 %v301, %v305
      %v310 = vadd.f32 %v302, %v306
      %v311 = vld [vmem:[%s165 + $0x90] sm:$0xff]
      %v312 = vld [vmem:[%s165 + $0x190] sm:$0xff]
      %v313 = vld [vmem:[%s165 + $0x290] sm:$0xff]
      %v314 = vld [vmem:[%s165 + $0x390] sm:$0xff]
      %v315 = vadd.f32 %v307, %v311
      %v316 = vadd.f32 %v308, %v312
      %v317 = vadd.f32 %v309, %v313
      %v318 = vadd.f32 %v310, %v314
      %v319 = vld [vmem:[%s165 + $0x98] sm:$0xff]
      %v320 = vld [vmem:[%s165 + $0x198] sm:$0xff]
      %v321 = vld [vmem:[%s165 + $0x298] sm:$0xff]
      %v322 = vld [vmem:[%s165 + $0x398] sm:$0xff]
      %v323 = vadd.f32 %v315, %v319
      %v324 = vadd.f32 %v316, %v320
      %v325 = vadd.f32 %v317, %v321
      %v326 = vadd.f32 %v318, %v322
      %v327 = vld [vmem:[%s165 + $0xa0] sm:$0xff]
      %v328 = vld [vmem:[%s165 + $0x1a0] sm:$0xff]
      %v329 = vld [vmem:[%s165 + $0x2a0] sm:$0xff]
      %v330 = vld [vmem:[%s165 + $0x3a0] sm:$0xff]
      %v331 = vadd.f32 %v323, %v327
      %v332 = vadd.f32 %v324, %v328
      %v333 = vadd.f32 %v325, %v329
      %v334 = vadd.f32 %v326, %v330
      %v335 = vld [vmem:[%s165 + $0xa8] sm:$0xff]
      %v336 = vld [vmem:[%s165 + $0x1a8] sm:$0xff]
      %v337 = vld [vmem:[%s165 + $0x2a8] sm:$0xff]
      %v338 = vld [vmem:[%s165 + $0x3a8] sm:$0xff]
      %v339 = vadd.f32 %v331, %v335
      %v340 = vadd.f32 %v332, %v336
      %v341 = vadd.f32 %v333, %v337
      %v342 = vadd.f32 %v334, %v338
      %v343 = vld [vmem:[%s165 + $0xb0] sm:$0xff]
      %v344 = vld [vmem:[%s165 + $0x1b0] sm:$0xff]
      %v345 = vld [vmem:[%s165 + $0x2b0] sm:$0xff]
      %v346 = vld [vmem:[%s165 + $0x3b0] sm:$0xff]
      %v347 = vadd.f32 %v339, %v343
      %v348 = vadd.f32 %v340, %v344
      %v349 = vadd.f32 %v341, %v345
      %v350 = vadd.f32 %v342, %v346
      %v351 = vld [vmem:[%s165 + $0xb8] sm:$0xff]
      %v352 = vld [vmem:[%s165 + $0x1b8] sm:$0xff]
      %v353 = vld [vmem:[%s165 + $0x2b8] sm:$0xff]
      %v354 = vld [vmem:[%s165 + $0x3b8] sm:$0xff]
      %v355 = vadd.f32 %v347, %v351
      %v356 = vadd.f32 %v348, %v352
      %v357 = vadd.f32 %v349, %v353
      %v358 = vadd.f32 %v350, %v354
      %v359 = vld [vmem:[%s165 + $0xc0] sm:$0xff]
      %v360 = vld [vmem:[%s165 + $0x1c0] sm:$0xff]
      %v361 = vld [vmem:[%s165 + $0x2c0] sm:$0xff]
      %v362 = vld [vmem:[%s165 + $0x3c0] sm:$0xff]
      %v363 = vadd.f32 %v355, %v359
      %v364 = vadd.f32 %v356, %v360
      %v365 = vadd.f32 %v357, %v361
      %v366 = vadd.f32 %v358, %v362
      %v367 = vld [vmem:[%s165 + $0xc8] sm:$0xff]
      %v368 = vld [vmem:[%s165 + $0x1c8] sm:$0xff]
      %v369 = vld [vmem:[%s165 + $0x2c8] sm:$0xff]
      %v370 = vld [vmem:[%s165 + $0x3c8] sm:$0xff]
      %v371 = vadd.f32 %v363, %v367
      %v372 = vadd.f32 %v364, %v368
      %v373 = vadd.f32 %v365, %v369
      %v374 = vadd.f32 %v366, %v370
      %v375 = vld [vmem:[%s165 + $0xd0] sm:$0xff]
      %v376 = vld [vmem:[%s165 + $0x1d0] sm:$0xff]
      %v377 = vld [vmem:[%s165 + $0x2d0] sm:$0xff]
      %v378 = vld [vmem:[%s165 + $0x3d0] sm:$0xff]
      %v379 = vadd.f32 %v371, %v375
      %v380 = vadd.f32 %v372, %v376
      %v381 = vadd.f32 %v373, %v377
      %v382 = vadd.f32 %v374, %v378
      %v383 = vld [vmem:[%s165 + $0xd8] sm:$0xff]
      %v384 = vld [vmem:[%s165 + $0x1d8] sm:$0xff]
      %v385 = vld [vmem:[%s165 + $0x2d8] sm:$0xff]
      %v386 = vld [vmem:[%s165 + $0x3d8] sm:$0xff]
      %v387 = vadd.f32 %v379, %v383
      %v388 = vadd.f32 %v380, %v384
      %v389 = vadd.f32 %v381, %v385
      %v390 = vadd.f32 %v382, %v386
      %v391 = vld [vmem:[%s165 + $0xe0] sm:$0xff]
      %v392 = vld [vmem:[%s165 + $0x1e0] sm:$0xff]
      %v393 = vld [vmem:[%s165 + $0x2e0] sm:$0xff]
      %v394 = vld [vmem:[%s165 + $0x3e0] sm:$0xff]
      %v395 = vadd.f32 %v387, %v391
      %v396 = vadd.f32 %v388, %v392
      %v397 = vadd.f32 %v389, %v393
      %v398 = vadd.f32 %v390, %v394
      %v399 = vld [vmem:[%s165 + $0xe8] sm:$0xff]
      %v400 = vld [vmem:[%s165 + $0x1e8] sm:$0xff]
      %v401 = vld [vmem:[%s165 + $0x2e8] sm:$0xff]
      %v402 = vld [vmem:[%s165 + $0x3e8] sm:$0xff]
      %v403 = vadd.f32 %v395, %v399
      %v404 = vadd.f32 %v396, %v400
      %v405 = vadd.f32 %v397, %v401
      %v406 = vadd.f32 %v398, %v402
      %v407 = vld [vmem:[%s165 + $0xf0] sm:$0xff]
      %v408 = vld [vmem:[%s165 + $0x1f0] sm:$0xff]
      %v409 = vld [vmem:[%s165 + $0x2f0] sm:$0xff]
      %v410 = vld [vmem:[%s165 + $0x3f0] sm:$0xff]
      %v411 = vadd.f32 %v403, %v407
      %v412 = vadd.f32 %v404, %v408
      %v413 = vadd.f32 %v405, %v409
      %v414 = vadd.f32 %v406, %v410
      %v415 = vld [vmem:[%s165 + $0xf8] sm:$0xff]
      %v416 = vld [vmem:[%s165 + $0x1f8] sm:$0xff]
      %v417 = vld [vmem:[%s165 + $0x2f8] sm:$0xff]
      %v418 = vld [vmem:[%s165 + $0x3f8] sm:$0xff]
      %v419 = vadd.f32 %v411, %v415
      %v420 = vadd.f32 %v412, %v416
      %v421 = vadd.f32 %v413, %v417
      %v422 = vadd.f32 %v414, %v418
      %423 = vadd.xlane.f32.xlu0 %v419
      %v424 = vpop.xlane.xlu0 %423
      %425 = vadd.xlane.f32.xlu0 %v420
      %v426 = vpop.xlane.xlu0 %425
      %427 = vadd.xlane.f32.xlu0 %v421
      %v428 = vpop.xlane.xlu0 %427
      %429 = vadd.xlane.f32.xlu0 %v422
      %v430 = vpop.xlane.xlu0 %429
      %v431 = vmul.f32 %v424, 0.00024414063
      %v432 = vmul.f32 %v426, 0.00024414063
      %v433 = vmul.f32 %v428, 0.00024414063
      %v434 = vmul.f32 %v430, 0.00024414063
      %v435 = vld [vmem:[%s1] sm:$0xff]
      %v436 = vld [vmem:[%s1 + $0x8] sm:$0xff]
      %v437 = vld [vmem:[%s1 + $0x10] sm:$0xff]
      %v438 = vld [vmem:[%s1 + $0x18] sm:$0xff]
      %v443 = vlaneseq
      %v444 = vand.u32 %v443, 127
      %v445 = vperm.slane %v431, %v444
      %v446 = vadd.s32 %v444, 4294967288
      %v447 = vperm.slane %v432, %v446
      %vm448 = vcmask 130112
      %v449 = vsel %vm448, %v447, %v445
      %v450 = vadd.s32 %v444, 4294967280
      %v451 = vperm.slane %v433, %v450
      %vm452 = vcmask 195712
      %v453 = vsel %vm452, %v451, %v449
      %v454 = vadd.s32 %v444, 4294967272
      %v455 = vperm.slane %v434, %v454
      %vm456 = vcmask 261312
      %v457 = vsel %vm456, %v455, %v453
      %vm458 = vcmask 261120
      %v459 = vsel %vm458, %v457, 0
      %461 = vmatpush.msra.mxu0 0.0
      %462 = vmatpush.msra.mxu0 0.0
      %463 = vmatpush.msra.mxu0 0.0
      %464 = vmatpush.msra.mxu0 0.0
      %465 = vmatpush.msra.mxu0 0.0
      %466 = vmatpush.msra.mxu0 0.0
      %467 = vmatpush.msra.mxu0 0.0
      %468 = vmatpush.msra.mxu0 0.0
      %469 = vmatpush.msra.mxu0 0.0
      %470 = vmatpush.msra.mxu0 0.0
      %471 = vmatpush.msra.mxu0 0.0
      %472 = vmatpush.msra.mxu0 0.0
      %473 = vmatpush.msra.mxu0 %v438
      %474 = vmatpush.msra.mxu0 %v437
      %475 = vmatpush.msra.mxu0 %v436
      %476 = vmatpush.msra.mxu0 %v435
      %477 = vmatmul.f32.gmra.mxu0 %v459
      %v478 = vpop.f32.mrf.mxu0
      %v479 = vadd.f32 0.0, %v478
      %480 = vdwg.mxu0
      %v481 = vmax.f32 %v479, 0.0
      %v482 = vld [vmem:[%s2] sm:$0xff]
      %vm483 = vcmask 64512
      %v485 = vsel %vm483, %v481, 0
      %487 = vmatpush.msra.mxu0 0.0
      %488 = vmatpush.msra.mxu0 0.0
      %489 = vmatpush.msra.mxu0 0.0
      %490 = vmatpush.msra.mxu0 0.0
      %491 = vmatpush.msra.mxu0 0.0
      %492 = vmatpush.msra.mxu0 0.0
      %493 = vmatpush.msra.mxu0 0.0
      %494 = vmatpush.msra.mxu0 0.0
      %495 = vmatpush.msra.mxu0 0.0
      %496 = vmatpush.msra.mxu0 0.0
      %497 = vmatpush.msra.mxu0 0.0
      %498 = vmatpush.msra.mxu0 0.0
      %499 = vmatpush.msra.mxu0 0.0
      %500 = vmatpush.msra.mxu0 0.0
      %501 = vmatpush.msra.mxu0 0.0
      %502 = vmatpush.msra.mxu0 %v482
      %503 = vmatmul.f32.gmra.mxu0 %v485
      %v504 = vpop.f32.mrf.mxu0
      %v505 = vadd.f32 0.0, %v504
      %506 = vdwg.mxu0
      %v507 = vsub.f32 0.0, %v505
      %v508 = vmul.f32 %v507, 1.442695
      %v509 = vpow.pop %v508
      %v510 = vadd.f32 %v509, 1.0
      %v511 = vrcp.pop %v510
      %v512 = vmul.f32 %v510, %v511
      %v513 = vsub.f32 1.0, %v512
      %v514 = vmul.f32 %v511, %v513
      %v515 = vadd.f32 %v511, %v514
      %vm516 = vweird.f32 %v510
      %vm517 = vweird.f32 %v511
      %vm518 = vmor %vm516, %vm517
      %v519 = vsel %vm518, %v511, %v515
      %v520 = vand.u32 2147483647, %v510
      %vm521 = vcmp.eq.f32.partialorder %v520, 8.507059e+37
      %v522 = vand.u32 %v510, 2147483648
      %v523 = vor.u32 1.1754944e-38, %v522
      %v524 = vsel %vm521, %v523, %v519
      %v525 = vmul.f32 1.0, %v524
      %v526 = vld [vmem:[%s165] sm:$0xff]
      %v527 = vld [vmem:[%s165 + $0x8] sm:$0xff]
      %v528 = vld [vmem:[%s165 + $0x10] sm:$0xff]
      %v529 = vld [vmem:[%s165 + $0x18] sm:$0xff]
      %v530 = vld [vmem:[%s165 + $0x20] sm:$0xff]
      %v531 = vld [vmem:[%s165 + $0x28] sm:$0xff]
      %v532 = vld [vmem:[%s165 + $0x30] sm:$0xff]
      %v533 = vld [vmem:[%s165 + $0x38] sm:$0xff]
      %v534 = vld [vmem:[%s165 + $0x40] sm:$0xff]
      %v535 = vld [vmem:[%s165 + $0x48] sm:$0xff]
      %v536 = vld [vmem:[%s165 + $0x50] sm:$0xff]
      %v537 = vld [vmem:[%s165 + $0x58] sm:$0xff]
      %v538 = vld [vmem:[%s165 + $0x60] sm:$0xff]
      %v539 = vld [vmem:[%s165 + $0x68] sm:$0xff]
      %v540 = vld [vmem:[%s165 + $0x70] sm:$0xff]
      %v541 = vld [vmem:[%s165 + $0x78] sm:$0xff]
      %v542 = vld [vmem:[%s165 + $0x80] sm:$0xff]
      %v543 = vld [vmem:[%s165 + $0x88] sm:$0xff]
      %v544 = vld [vmem:[%s165 + $0x90] sm:$0xff]
      %v545 = vld [vmem:[%s165 + $0x98] sm:$0xff]
      %v546 = vld [vmem:[%s165 + $0xa0] sm:$0xff]
      %v547 = vld [vmem:[%s165 + $0xa8] sm:$0xff]
      %v548 = vld [vmem:[%s165 + $0xb0] sm:$0xff]
      %v549 = vld [vmem:[%s165 + $0xb8] sm:$0xff]
      %v550 = vld [vmem:[%s165 + $0xc0] sm:$0xff]
      %v551 = vld [vmem:[%s165 + $0xc8] sm:$0xff]
      %v552 = vld [vmem:[%s165 + $0xd0] sm:$0xff]
      %v553 = vld [vmem:[%s165 + $0xd8] sm:$0xff]
      %v554 = vld [vmem:[%s165 + $0xe0] sm:$0xff]
      %v555 = vld [vmem:[%s165 + $0xe8] sm:$0xff]
      %v556 = vld [vmem:[%s165 + $0xf0] sm:$0xff]
      %v557 = vld [vmem:[%s165 + $0x100] sm:$0xff]
      %v558 = vld [vmem:[%s165 + $0x108] sm:$0xff]
      %v559 = vld [vmem:[%s165 + $0x110] sm:$0xff]
      %v560 = vld [vmem:[%s165 + $0x118] sm:$0xff]
      %v561 = vld [vmem:[%s165 + $0x120] sm:$0xff]
      %v562 = vld [vmem:[%s165 + $0x128] sm:$0xff]
      %v563 = vld [vmem:[%s165 + $0x130] sm:$0xff]
      %v564 = vld [vmem:[%s165 + $0x138] sm:$0xff]
      %v565 = vld [vmem:[%s165 + $0x140] sm:$0xff]
      %v566 = vld [vmem:[%s165 + $0x148] sm:$0xff]
      %v567 = vld [vmem:[%s165 + $0x150] sm:$0xff]
      %v568 = vld [vmem:[%s165 + $0x158] sm:$0xff]
      %v569 = vld [vmem:[%s165 + $0x160] sm:$0xff]
      %v570 = vld [vmem:[%s165 + $0x168] sm:$0xff]
      %v571 = vld [vmem:[%s165 + $0x170] sm:$0xff]
      %v572 = vld [vmem:[%s165 + $0x178] sm:$0xff]
      %v573 = vld [vmem:[%s165 + $0x180] sm:$0xff]
      %v574 = vld [vmem:[%s165 + $0x188] sm:$0xff]
      %v575 = vld [vmem:[%s165 + $0x190] sm:$0xff]
      %v576 = vld [vmem:[%s165 + $0x198] sm:$0xff]
      %v577 = vld [vmem:[%s165 + $0x1a0] sm:$0xff]
      %v578 = vld [vmem:[%s165 + $0x1a8] sm:$0xff]
      %v579 = vld [vmem:[%s165 + $0x1b0] sm:$0xff]
      %v580 = vld [vmem:[%s165 + $0x1b8] sm:$0xff]
      %v581 = vld [vmem:[%s165 + $0x1c0] sm:$0xff]
      %v582 = vld [vmem:[%s165 + $0x1c8] sm:$0xff]
      %v583 = vld [vmem:[%s165 + $0x1d0] sm:$0xff]
      %v584 = vld [vmem:[%s165 + $0x1d8] sm:$0xff]
      %v585 = vld [vmem:[%s165 + $0x1e0] sm:$0xff]
      %v586 = vld [vmem:[%s165 + $0x1e8] sm:$0xff]
      %v587 = vld [vmem:[%s165 + $0x1f0] sm:$0xff]
      %v588 = vld [vmem:[%s165 + $0x200] sm:$0xff]
      %v589 = vld [vmem:[%s165 + $0x208] sm:$0xff]
      %v590 = vld [vmem:[%s165 + $0x210] sm:$0xff]
      %v591 = vld [vmem:[%s165 + $0x218] sm:$0xff]
      %v592 = vld [vmem:[%s165 + $0x220] sm:$0xff]
      %v593 = vld [vmem:[%s165 + $0x228] sm:$0xff]
      %v594 = vld [vmem:[%s165 + $0x230] sm:$0xff]
      %v595 = vld [vmem:[%s165 + $0x238] sm:$0xff]
      %v596 = vld [vmem:[%s165 + $0x240] sm:$0xff]
      %v597 = vld [vmem:[%s165 + $0x248] sm:$0xff]
      %v598 = vld [vmem:[%s165 + $0x250] sm:$0xff]
      %v599 = vld [vmem:[%s165 + $0x258] sm:$0xff]
      %v600 = vld [vmem:[%s165 + $0x260] sm:$0xff]
      %v601 = vld [vmem:[%s165 + $0x268] sm:$0xff]
      %v602 = vld [vmem:[%s165 + $0x270] sm:$0xff]
      %v603 = vld [vmem:[%s165 + $0x278] sm:$0xff]
      %v604 = vld [vmem:[%s165 + $0x280] sm:$0xff]
      %v605 = vld [vmem:[%s165 + $0x288] sm:$0xff]
      %v606 = vld [vmem:[%s165 + $0x290] sm:$0xff]
      %v607 = vld [vmem:[%s165 + $0x298] sm:$0xff]
      %v608 = vld [vmem:[%s165 + $0x2a0] sm:$0xff]
      %v609 = vld [vmem:[%s165 + $0x2a8] sm:$0xff]
      %v610 = vld [vmem:[%s165 + $0x2b0] sm:$0xff]
      %v611 = vld [vmem:[%s165 + $0x2b8] sm:$0xff]
      %v612 = vld [vmem:[%s165 + $0x2c0] sm:$0xff]
      %v613 = vld [vmem:[%s165 + $0x2c8] sm:$0xff]
      %v614 = vld [vmem:[%s165 + $0x2d0] sm:$0xff]
      %v615 = vld [vmem:[%s165 + $0x2d8] sm:$0xff]
      %v616 = vld [vmem:[%s165 + $0x2e0] sm:$0xff]
      %v617 = vld [vmem:[%s165 + $0x2e8] sm:$0xff]
      %v618 = vld [vmem:[%s165 + $0x2f0] sm:$0xff]
      %v619 = vld [vmem:[%s165 + $0x300] sm:$0xff]
      %v620 = vld [vmem:[%s165 + $0x308] sm:$0xff]
      %v621 = vld [vmem:[%s165 + $0x310] sm:$0xff]
      %v622 = vld [vmem:[%s165 + $0x318] sm:$0xff]
      %v623 = vld [vmem:[%s165 + $0x320] sm:$0xff]
      %v624 = vld [vmem:[%s165 + $0x328] sm:$0xff]
      %v625 = vld [vmem:[%s165 + $0x330] sm:$0xff]
      %v626 = vld [vmem:[%s165 + $0x338] sm:$0xff]
      %v627 = vld [vmem:[%s165 + $0x340] sm:$0xff]
      %v628 = vld [vmem:[%s165 + $0x348] sm:$0xff]
      %v629 = vld [vmem:[%s165 + $0x350] sm:$0xff]
      %v630 = vld [vmem:[%s165 + $0x358] sm:$0xff]
      %v631 = vld [vmem:[%s165 + $0x360] sm:$0xff]
      %v632 = vld [vmem:[%s165 + $0x368] sm:$0xff]
      %v633 = vld [vmem:[%s165 + $0x370] sm:$0xff]
      %v634 = vld [vmem:[%s165 + $0x378] sm:$0xff]
      %v635 = vld [vmem:[%s165 + $0x380] sm:$0xff]
      %v636 = vld [vmem:[%s165 + $0x388] sm:$0xff]
      %v637 = vld [vmem:[%s165 + $0x390] sm:$0xff]
      %v638 = vld [vmem:[%s165 + $0x398] sm:$0xff]
      %v639 = vld [vmem:[%s165 + $0x3a0] sm:$0xff]
      %v640 = vld [vmem:[%s165 + $0x3a8] sm:$0xff]
      %v641 = vld [vmem:[%s165 + $0x3b0] sm:$0xff]
      %v642 = vld [vmem:[%s165 + $0x3b8] sm:$0xff]
      %v643 = vld [vmem:[%s165 + $0x3c0] sm:$0xff]
      %v644 = vld [vmem:[%s165 + $0x3c8] sm:$0xff]
      %v645 = vld [vmem:[%s165 + $0x3d0] sm:$0xff]
      %v646 = vld [vmem:[%s165 + $0x3d8] sm:$0xff]
      %v647 = vld [vmem:[%s165 + $0x3e0] sm:$0xff]
      %v648 = vld [vmem:[%s165 + $0x3e8] sm:$0xff]
      %v649 = vld [vmem:[%s165 + $0x3f0] sm:$0xff]
      %v650 = vperm.slane %v525, 0
      %v651 = vlaneseq
      %v652 = vshrl.u32 %v651, 7
      %654 = vset.pattern.permute.xlu0 %v652
      %655 = vperm.xlu0 %654, %v650
      %v656 = vpop.permute.xlu0 %655
      %v657 = vlaneseq
      %v658 = vshrl.u32 %v657, 7
      %v659 = vadd.s32 %v658, 8
      %660 = vset.pattern.permute.xlu0 %v659
      %661 = vperm.xlu0 %660, %v650
      %v662 = vpop.permute.xlu0 %661
      %v663 = vlaneseq
      %v664 = vshrl.u32 %v663, 7
      %v665 = vadd.s32 %v664, 16
      %666 = vset.pattern.permute.xlu0 %v665
      %667 = vperm.xlu0 %666, %v650
      %v668 = vpop.permute.xlu0 %667
      %v669 = vlaneseq
      %v670 = vshrl.u32 %v669, 7
      %v671 = vadd.s32 %v670, 24
      %672 = vset.pattern.permute.xlu0 %v671
      %673 = vperm.xlu0 %672, %v650
      %v674 = vpop.permute.xlu0 %673
      %v675 = vmul.f32 %v526, %v656
      %v676 = vmul.f32 %v527, %v656
      %v677 = vmul.f32 %v528, %v656
      %v678 = vmul.f32 %v529, %v656
      %v679 = vmul.f32 %v530, %v656
      %v680 = vmul.f32 %v531, %v656
      %v681 = vmul.f32 %v532, %v656
      %v682 = vmul.f32 %v533, %v656
      %v683 = vmul.f32 %v534, %v656
      %v684 = vmul.f32 %v535, %v656
      %v685 = vmul.f32 %v536, %v656
      %v686 = vmul.f32 %v537, %v656
      %v687 = vmul.f32 %v538, %v656
      %v688 = vmul.f32 %v539, %v656
      %v689 = vmul.f32 %v540, %v656
      %v690 = vmul.f32 %v541, %v656
      %v691 = vmul.f32 %v542, %v656
      %v692 = vmul.f32 %v543, %v656
      %v693 = vmul.f32 %v544, %v656
      %v694 = vmul.f32 %v545, %v656
      %v695 = vmul.f32 %v546, %v656
      %v696 = vmul.f32 %v547, %v656
      %v697 = vmul.f32 %v548, %v656
      %v698 = vmul.f32 %v549, %v656
      %v699 = vmul.f32 %v550, %v656
      %v700 = vmul.f32 %v551, %v656
      %v701 = vmul.f32 %v552, %v656
      %v702 = vmul.f32 %v553, %v656
      %v703 = vmul.f32 %v554, %v656
      %v704 = vmul.f32 %v555, %v656
      %v705 = vmul.f32 %v556, %v656
      %v706 = vmul.f32 %v415, %v656
      %v707 = vmul.f32 %v557, %v662
      %v708 = vmul.f32 %v558, %v662
      %v709 = vmul.f32 %v559, %v662
      %v710 = vmul.f32 %v560, %v662
      %v711 = vmul.f32 %v561, %v662
      %v712 = vmul.f32 %v562, %v662
      %v713 = vmul.f32 %v563, %v662
      %v714 = vmul.f32 %v564, %v662
      %v715 = vmul.f32 %v565, %v662
      %v716 = vmul.f32 %v566, %v662
      %v717 = vmul.f32 %v567, %v662
      %v718 = vmul.f32 %v568, %v662
      %v719 = vmul.f32 %v569, %v662
      %v720 = vmul.f32 %v570, %v662
      %v721 = vmul.f32 %v571, %v662
      %v722 = vmul.f32 %v572, %v662
      %v723 = vmul.f32 %v573, %v662
      %v724 = vmul.f32 %v574, %v662
      %v725 = vmul.f32 %v575, %v662
      %v726 = vmul.f32 %v576, %v662
      %v727 = vmul.f32 %v577, %v662
      %v728 = vmul.f32 %v578, %v662
      %v729 = vmul.f32 %v579, %v662
      %v730 = vmul.f32 %v580, %v662
      %v731 = vmul.f32 %v581, %v662
      %v732 = vmul.f32 %v582, %v662
      %v733 = vmul.f32 %v583, %v662
      %v734 = vmul.f32 %v584, %v662
      %v735 = vmul.f32 %v585, %v662
      %v736 = vmul.f32 %v586, %v662
      %v737 = vmul.f32 %v587, %v662
      %v738 = vmul.f32 %v416, %v662
      %v739 = vmul.f32 %v588, %v668
      %v740 = vmul.f32 %v589, %v668
      %v741 = vmul.f32 %v590, %v668
      %v742 = vmul.f32 %v591, %v668
      %v743 = vmul.f32 %v592, %v668
      %v744 = vmul.f32 %v593, %v668
      %v745 = vmul.f32 %v594, %v668
      %v746 = vmul.f32 %v595, %v668
      %v747 = vmul.f32 %v596, %v668
      %v748 = vmul.f32 %v597, %v668
      %v749 = vmul.f32 %v598, %v668
      %v750 = vmul.f32 %v599, %v668
      %v751 = vmul.f32 %v600, %v668
      %v752 = vmul.f32 %v601, %v668
      %v753 = vmul.f32 %v602, %v668
      %v754 = vmul.f32 %v603, %v668
      %v755 = vmul.f32 %v604, %v668
      %v756 = vmul.f32 %v605, %v668
      %v757 = vmul.f32 %v606, %v668
      %v758 = vmul.f32 %v607, %v668
      %v759 = vmul.f32 %v608, %v668
      %v760 = vmul.f32 %v609, %v668
      %v761 = vmul.f32 %v610, %v668
      %v762 = vmul.f32 %v611, %v668
      %v763 = vmul.f32 %v612, %v668
      %v764 = vmul.f32 %v613, %v668
      %v765 = vmul.f32 %v614, %v668
      %v766 = vmul.f32 %v615, %v668
      %v767 = vmul.f32 %v616, %v668
      %v768 = vmul.f32 %v617, %v668
      %v769 = vmul.f32 %v618, %v668
      %v770 = vmul.f32 %v417, %v668
      %v771 = vmul.f32 %v619, %v674
      %v772 = vmul.f32 %v620, %v674
      %v773 = vmul.f32 %v621, %v674
      %v774 = vmul.f32 %v622, %v674
      %v775 = vmul.f32 %v623, %v674
      %v776 = vmul.f32 %v624, %v674
      %v777 = vmul.f32 %v625, %v674
      %v778 = vmul.f32 %v626, %v674
      %v779 = vmul.f32 %v627, %v674
      %v780 = vmul.f32 %v628, %v674
      %v781 = vmul.f32 %v629, %v674
      %v782 = vmul.f32 %v630, %v674
      %v783 = vmul.f32 %v631, %v674
      %v784 = vmul.f32 %v632, %v674
      %v785 = vmul.f32 %v633, %v674
      %v786 = vmul.f32 %v634, %v674
      %v787 = vmul.f32 %v635, %v674
      %v788 = vmul.f32 %v636, %v674
      %v789 = vmul.f32 %v637, %v674
      %v790 = vmul.f32 %v638, %v674
      %v791 = vmul.f32 %v639, %v674
      %v792 = vmul.f32 %v640, %v674
      %v793 = vmul.f32 %v641, %v674
      %v794 = vmul.f32 %v642, %v674
      %v795 = vmul.f32 %v643, %v674
      %v796 = vmul.f32 %v644, %v674
      %v797 = vmul.f32 %v645, %v674
      %v798 = vmul.f32 %v646, %v674
      %v799 = vmul.f32 %v647, %v674
      %v800 = vmul.f32 %v648, %v674
      %v801 = vmul.f32 %v649, %v674
      %v802 = vmul.f32 %v418, %v674
      %803 = vst [vmem:[%s170] sm:$0xff] %v675
      %804 = vst [vmem:[%s170 + $0x8] sm:$0xff] %v676
      %805 = vst [vmem:[%s170 + $0x10] sm:$0xff] %v677
      %806 = vst [vmem:[%s170 + $0x18] sm:$0xff] %v678
      %807 = vst [vmem:[%s170 + $0x20] sm:$0xff] %v679
      %808 = vst [vmem:[%s170 + $0x28] sm:$0xff] %v680
      %809 = vst [vmem:[%s170 + $0x30] sm:$0xff] %v681
      %810 = vst [vmem:[%s170 + $0x38] sm:$0xff] %v682
      %811 = vst [vmem:[%s170 + $0x40] sm:$0xff] %v683
      %812 = vst [vmem:[%s170 + $0x48] sm:$0xff] %v684
      %813 = vst [vmem:[%s170 + $0x50] sm:$0xff] %v685
      %814 = vst [vmem:[%s170 + $0x58] sm:$0xff] %v686
      %815 = vst [vmem:[%s170 + $0x60] sm:$0xff] %v687
      %816 = vst [vmem:[%s170 + $0x68] sm:$0xff] %v688
      %817 = vst [vmem:[%s170 + $0x70] sm:$0xff] %v689
      %818 = vst [vmem:[%s170 + $0x78] sm:$0xff] %v690
      %819 = vst [vmem:[%s170 + $0x80] sm:$0xff] %v691
      %820 = vst [vmem:[%s170 + $0x88] sm:$0xff] %v692
      %821 = vst [vmem:[%s170 + $0x90] sm:$0xff] %v693
      %822 = vst [vmem:[%s170 + $0x98] sm:$0xff] %v694
      %823 = vst [vmem:[%s170 + $0xa0] sm:$0xff] %v695
      %824 = vst [vmem:[%s170 + $0xa8] sm:$0xff] %v696
      %825 = vst [vmem:[%s170 + $0xb0] sm:$0xff] %v697
      %826 = vst [vmem:[%s170 + $0xb8] sm:$0xff] %v698
      %827 = vst [vmem:[%s170 + $0xc0] sm:$0xff] %v699
      %828 = vst [vmem:[%s170 + $0xc8] sm:$0xff] %v700
      %829 = vst [vmem:[%s170 + $0xd0] sm:$0xff] %v701
      %830 = vst [vmem:[%s170 + $0xd8] sm:$0xff] %v702
      %831 = vst [vmem:[%s170 + $0xe0] sm:$0xff] %v703
      %832 = vst [vmem:[%s170 + $0xe8] sm:$0xff] %v704
      %833 = vst [vmem:[%s170 + $0xf0] sm:$0xff] %v705
      %834 = vst [vmem:[%s170 + $0xf8] sm:$0xff] %v706
      %835 = vst [vmem:[%s170 + $0x100] sm:$0xff] %v707
      %836 = vst [vmem:[%s170 + $0x108] sm:$0xff] %v708
      %837 = vst [vmem:[%s170 + $0x110] sm:$0xff] %v709
      %838 = vst [vmem:[%s170 + $0x118] sm:$0xff] %v710
      %839 = vst [vmem:[%s170 + $0x120] sm:$0xff] %v711
      %840 = vst [vmem:[%s170 + $0x128] sm:$0xff] %v712
      %841 = vst [vmem:[%s170 + $0x130] sm:$0xff] %v713
      %842 = vst [vmem:[%s170 + $0x138] sm:$0xff] %v714
      %843 = vst [vmem:[%s170 + $0x140] sm:$0xff] %v715
      %844 = vst [vmem:[%s170 + $0x148] sm:$0xff] %v716
      %845 = vst [vmem:[%s170 + $0x150] sm:$0xff] %v717
      %846 = vst [vmem:[%s170 + $0x158] sm:$0xff] %v718
      %847 = vst [vmem:[%s170 + $0x160] sm:$0xff] %v719
      %848 = vst [vmem:[%s170 + $0x168] sm:$0xff] %v720
      %849 = vst [vmem:[%s170 + $0x170] sm:$0xff] %v721
      %850 = vst [vmem:[%s170 + $0x178] sm:$0xff] %v722
      %851 = vst [vmem:[%s170 + $0x180] sm:$0xff] %v723
      %852 = vst [vmem:[%s170 + $0x188] sm:$0xff] %v724
      %853 = vst [vmem:[%s170 + $0x190] sm:$0xff] %v725
      %854 = vst [vmem:[%s170 + $0x198] sm:$0xff] %v726
      %855 = vst [vmem:[%s170 + $0x1a0] sm:$0xff] %v727
      %856 = vst [vmem:[%s170 + $0x1a8] sm:$0xff] %v728
      %857 = vst [vmem:[%s170 + $0x1b0] sm:$0xff] %v729
      %858 = vst [vmem:[%s170 + $0x1b8] sm:$0xff] %v730
      %859 = vst [vmem:[%s170 + $0x1c0] sm:$0xff] %v731
      %860 = vst [vmem:[%s170 + $0x1c8] sm:$0xff] %v732
      %861 = vst [vmem:[%s170 + $0x1d0] sm:$0xff] %v733
      %862 = vst [vmem:[%s170 + $0x1d8] sm:$0xff] %v734
      %863 = vst [vmem:[%s170 + $0x1e0] sm:$0xff] %v735
      %864 = vst [vmem:[%s170 + $0x1e8] sm:$0xff] %v736
      %865 = vst [vmem:[%s170 + $0x1f0] sm:$0xff] %v737
      %866 = vst [vmem:[%s170 + $0x1f8] sm:$0xff] %v738
      %867 = vst [vmem:[%s170 + $0x200] sm:$0xff] %v739
      %868 = vst [vmem:[%s170 + $0x208] sm:$0xff] %v740
      %869 = vst [vmem:[%s170 + $0x210] sm:$0xff] %v741
      %870 = vst [vmem:[%s170 + $0x218] sm:$0xff] %v742
      %871 = vst [vmem:[%s170 + $0x220] sm:$0xff] %v743
      %872 = vst [vmem:[%s170 + $0x228] sm:$0xff] %v744
      %873 = vst [vmem:[%s170 + $0x230] sm:$0xff] %v745
      %874 = vst [vmem:[%s170 + $0x238] sm:$0xff] %v746
      %875 = vst [vmem:[%s170 + $0x240] sm:$0xff] %v747
      %876 = vst [vmem:[%s170 + $0x248] sm:$0xff] %v748
      %877 = vst [vmem:[%s170 + $0x250] sm:$0xff] %v749
      %878 = vst [vmem:[%s170 + $0x258] sm:$0xff] %v750
      %879 = vst [vmem:[%s170 + $0x260] sm:$0xff] %v751
      %880 = vst [vmem:[%s170 + $0x268] sm:$0xff] %v752
      %881 = vst [vmem:[%s170 + $0x270] sm:$0xff] %v753
      %882 = vst [vmem:[%s170 + $0x278] sm:$0xff] %v754
      %883 = vst [vmem:[%s170 + $0x280] sm:$0xff] %v755
      %884 = vst [vmem:[%s170 + $0x288] sm:$0xff] %v756
      %885 = vst [vmem:[%s170 + $0x290] sm:$0xff] %v757
      %886 = vst [vmem:[%s170 + $0x298] sm:$0xff] %v758
      %887 = vst [vmem:[%s170 + $0x2a0] sm:$0xff] %v759
      %888 = vst [vmem:[%s170 + $0x2a8] sm:$0xff] %v760
      %889 = vst [vmem:[%s170 + $0x2b0] sm:$0xff] %v761
      %890 = vst [vmem:[%s170 + $0x2b8] sm:$0xff] %v762
      %891 = vst [vmem:[%s170 + $0x2c0] sm:$0xff] %v763
      %892 = vst [vmem:[%s170 + $0x2c8] sm:$0xff] %v764
      %893 = vst [vmem:[%s170 + $0x2d0] sm:$0xff] %v765
      %894 = vst [vmem:[%s170 + $0x2d8] sm:$0xff] %v766
      %895 = vst [vmem:[%s170 + $0x2e0] sm:$0xff] %v767
      %896 = vst [vmem:[%s170 + $0x2e8] sm:$0xff] %v768
      %897 = vst [vmem:[%s170 + $0x2f0] sm:$0xff] %v769
      %898 = vst [vmem:[%s170 + $0x2f8] sm:$0xff] %v770
      %899 = vst [vmem:[%s170 + $0x300] sm:$0xff] %v771
      %900 = vst [vmem:[%s170 + $0x308] sm:$0xff] %v772
      %901 = vst [vmem:[%s170 + $0x310] sm:$0xff] %v773
      %902 = vst [vmem:[%s170 + $0x318] sm:$0xff] %v774
      %903 = vst [vmem:[%s170 + $0x320] sm:$0xff] %v775
      %904 = vst [vmem:[%s170 + $0x328] sm:$0xff] %v776
      %905 = vst [vmem:[%s170 + $0x330] sm:$0xff] %v777
      %906 = vst [vmem:[%s170 + $0x338] sm:$0xff] %v778
      %907 = vst [vmem:[%s170 + $0x340] sm:$0xff] %v779
      %908 = vst [vmem:[%s170 + $0x348] sm:$0xff] %v780
      %909 = vst [vmem:[%s170 + $0x350] sm:$0xff] %v781
      %910 = vst [vmem:[%s170 + $0x358] sm:$0xff] %v782
      %911 = vst [vmem:[%s170 + $0x360] sm:$0xff] %v783
      %912 = vst [vmem:[%s170 + $0x368] sm:$0xff] %v784
      %913 = vst [vmem:[%s170 + $0x370] sm:$0xff] %v785
      %914 = vst [vmem:[%s170 + $0x378] sm:$0xff] %v786
      %915 = vst [vmem:[%s170 + $0x380] sm:$0xff] %v787
      %916 = vst [vmem:[%s170 + $0x388] sm:$0xff] %v788
      %917 = vst [vmem:[%s170 + $0x390] sm:$0xff] %v789
      %918 = vst [vmem:[%s170 + $0x398] sm:$0xff] %v790
      %919 = vst [vmem:[%s170 + $0x3a0] sm:$0xff] %v791
      %920 = vst [vmem:[%s170 + $0x3a8] sm:$0xff] %v792
      %921 = vst [vmem:[%s170 + $0x3b0] sm:$0xff] %v793
      %922 = vst [vmem:[%s170 + $0x3b8] sm:$0xff] %v794
      %923 = vst [vmem:[%s170 + $0x3c0] sm:$0xff] %v795
      %924 = vst [vmem:[%s170 + $0x3c8] sm:$0xff] %v796
      %925 = vst [vmem:[%s170 + $0x3d0] sm:$0xff] %v797
      %926 = vst [vmem:[%s170 + $0x3d8] sm:$0xff] %v798
      %927 = vst [vmem:[%s170 + $0x3e0] sm:$0xff] %v799
      %928 = vst [vmem:[%s170 + $0x3e8] sm:$0xff] %v800
      %929 = vst [vmem:[%s170 + $0x3f0] sm:$0xff] %v801
      %930 = vst [vmem:[%s170 + $0x3f8] sm:$0xff] %v802
      %p931 = scmp.lt.s32.totalorder %s14, 1
      %s932 = scalar_select %p931, %s14, 1
      %s933 = smul.addr %s932, 128
      %s934 = smul.addr %s933, 8
      %s935 = scalar_lea.vmem %s3, %s934
      // Predicated region
      $region33: #{channel_attention.1} parent=31 // pred_check
        %p936 = pneg %p100
      $region34: #{channel_attention.1} parent=31 // pred_check_branch
        %938 = sbr.rel (%p936) target = $region36
      $region35: #{channel_attention.1} parent=31 // pred_region
        _
      $region36: #{channel_attention.1} parent=31 // pred_fallthru
        _
    $region32: #{channel_attention.1} parent=5 // pred_fallthru
      _
    %p939 = scmp.le.s32.totalorder 2, %s9
    // Predicated region
    $region37: #{channel_attention.1} parent=5 // pred_check
      %p940 = pneg %p939
    $region38: #{channel_attention.1} parent=5 // pred_check_branch
      %942 = sbr.rel (%p940) target = $region40
    $region39: #{channel_attention.1} parent=5 // pred_region
      %s943 = ssub.s32 %s9, 2
      // Predicated region
      $region41: #{channel_attention.1} parent=39 // pred_check
        %p944 = pneg %p106
      $region42: #{channel_attention.1} parent=39 // pred_check_branch
        %946 = sbr.rel (%p944) target = $region44
      $region43: #{channel_attention.1} parent=39 // pred_region
        %p947 = scmp.lt.s32.totalorder %s15, 1
        %s948 = scalar_select %p947, %s15, 1
        %s949 = smul.addr %s948, 128
        %s950 = smul.addr %s949, 8
        %s951 = scalar_lea.vmem %s3, %s950
      $region44: #{channel_attention.1} parent=39 // pred_fallthru
        _
    $region40: #{channel_attention.1} parent=5 // pred_fallthru
      _
  $region6: #{channel_attention.1} parent=0 // loop_footer
    %s13 = sadd.s32 1, %s9
  $region7: #{channel_attention.1} parent=0 // loop_footer_branch
    %8 = sbr.rel target = $region3
  $region8: #{channel_attention.1} parent=0 // loop_exit
    _

</llo_original>
